<compile_context>
chip_gen: v5e
topology: v5e:2x2
jax: 0.10.0
libtpu: 0.0.40
codegen_flags: <defaults>
</compile_context>

<pallas_src>
import jax
import jax.numpy as jnp
from jax.experimental import pallas as pl
from jax.experimental.pallas import tpu as pltpu


def _mlp_kernel(x_ref, w1_ref, b1_ref, w2_ref, b2_ref,
                w3_ref, b3_ref, w4_ref, b4_ref, o_ref):
    # x tile: (TILE_B, input_dim) bf16.  Weights: bf16.  Biases: f32.
    x = x_ref[...]

    # fc1 + ReLU   (bf16 MXU matmul, f32 accumulation, f32 epilogue)
    h = jnp.dot(x, w1_ref[...], preferred_element_type=jnp.float32) + b1_ref[...]
    h = jnp.maximum(h, 0.0).astype(jnp.bfloat16)

    # fc2 + ReLU
    h = jnp.dot(h, w2_ref[...], preferred_element_type=jnp.float32) + b2_ref[...]
    h = jnp.maximum(h, 0.0).astype(jnp.bfloat16)

    # fc3 + ReLU
    h = jnp.dot(h, w3_ref[...], preferred_element_type=jnp.float32) + b3_ref[...]
    h = jnp.maximum(h, 0.0).astype(jnp.bfloat16)

    # fc4 (out_features == 1): contract the 32-wide feature axis of h against the
    # single weight row, producing a lane-dense (1, TILE_B) logit row (batch on
    # the lane axis) instead of a masked (TILE_B, 1) single-lane store.
    logits = jax.lax.dot_general(
        w4_ref[...], h,                       # (1, 32) x (TILE_B, 32)
        dimension_numbers=(((1,), (1,)), ((), ())),
        preferred_element_type=jnp.float32)   # -> (1, TILE_B)
    o_ref[...] = jax.nn.sigmoid(logits + b4_ref[...])


def heart_attack_mlp_forward(x, params, *, tile_b=256):
    """x: [B, input_dim] float32 -> [B] float32 (matches torch.sigmoid(...).squeeze())."""
    assert tile_b % 128 == 0, "tile_b must be a multiple of 128 (lane width)"
    w1, b1, w2, b2, w3, b3, w4, b4 = params
    B, input_dim = x.shape

    # Pad batch up to a multiple of tile_b so every grid step sees a full tile.
    B_pad = ((B + tile_b - 1) // tile_b) * tile_b
    if B_pad != B:
        x = jnp.pad(x, ((0, B_pad - B), (0, 0)))
    G = B_pad // tile_b

    # bf16 operands for the MXU; biases stay f32 for the epilogue.
    xb = x.astype(jnp.bfloat16)
    w1b = w1.astype(jnp.bfloat16)
    w2b = w2.astype(jnp.bfloat16)
    w3b = w3.astype(jnp.bfloat16)
    w4b = w4.astype(jnp.bfloat16).reshape(1, -1)   # (32, 1) -> (1, 32) weight row

    param_bytes = ((w1b.size + w2b.size + w3b.size + w4b.size) * 2
                   + (b1.size + b2.size + b3.size + b4.size) * 4)
    cost = pl.CostEstimate(
        flops=2 * B_pad * (input_dim * 128 + 128 * 64 + 64 * 32 + 32),
        transcendentals=B_pad,                       # one exp per row (sigmoid)
        bytes_accessed=xb.size * 2 + param_bytes + B_pad * 4,
    )

    const2d = lambda i: (0, 0)   # weights/biases: same block every step -> VMEM-resident

    out = pl.pallas_call(
        _mlp_kernel,
        out_shape=jax.ShapeDtypeStruct((G, tile_b), jnp.float32),
        grid=(G,),
        in_specs=[
            pl.BlockSpec((tile_b, input_dim), lambda i: (i, 0)),  # x tile (pipelined)
            pl.BlockSpec((input_dim, 128), const2d),              # W1
            pl.BlockSpec((1, 128), const2d),                      # b1
            pl.BlockSpec((128, 64), const2d),                     # W2
            pl.BlockSpec((1, 64), const2d),                       # b2
            pl.BlockSpec((64, 32), const2d),                      # W3
            pl.BlockSpec((1, 32), const2d),                       # b3
            pl.BlockSpec((1, 32), const2d),                       # W4 row
            pl.BlockSpec((1, 1), const2d),                        # b4
        ],
        out_specs=pl.BlockSpec((1, tile_b), lambda i: (i, 0)),    # lane-dense output
        compiler_params=pltpu.CompilerParams(
            dimension_semantics=("parallel",),        # shard batch tiles across TCs (v7x)
            vmem_limit_bytes=32 * 1024 * 1024,        # explicit: safe on v7x's 64 MiB VMEM
        ),
        cost_estimate=cost,
    )(xb, w1b, b1, w2b, b2, w3b, b3, w4b, b4)

    # (G, tile_b) -> (B,)  (drop batch padding; this is the .squeeze())
    return out.reshape(-1)[:B]


def init_params(key, input_dim):
    """Deterministic init mimicking nn.Linear's U(-1/sqrt(fan_in), 1/sqrt(fan_in)).

    Weights stored as [in_features, out_features] (transposed vs. PyTorch) so the
    kernel computes y = x @ W + b.  Biases stored as [1, out_features].
    """
    dims = [(input_dim, 128), (128, 64), (64, 32), (32, 1)]
    params = []
    for (fan_in, fan_out) in dims:
        key, kw, kb = jax.random.split(key, 3)
        bound = 1.0 / jnp.sqrt(jnp.float32(fan_in))
        w = jax.random.uniform(kw, (fan_in, fan_out), jnp.float32, -bound, bound)
        b = jax.random.uniform(kb, (1, fan_out), jnp.float32, -bound, bound)
        params += [w, b]
    return tuple(params)


def _reference_forward(x, params):
    """Pure-JAX f32 reference."""
    w1, b1, w2, b2, w3, b3, w4, b4 = params
    h = jnp.maximum(x @ w1 + b1, 0.0)
    h = jnp.maximum(h @ w2 + b2, 0.0)
    h = jnp.maximum(h @ w3 + b3, 0.0)
    return jax.nn.sigmoid(h @ w4 + b4).reshape(x.shape[0])


if __name__ == "__main__":
    key = jax.random.PRNGKey(0)
    input_dim = 16          # number of tabular features

    key, kx, kp, kx2 = jax.random.split(key, 4)
    params = init_params(kp, input_dim)

    # Small primary check (single grid step, batch padded to one tile).
    batch = 8
    x = jax.random.normal(kx, (batch, input_dim), jnp.float32)
    y = jax.block_until_ready(heart_attack_mlp_forward(x, params))
    y_ref = _reference_forward(x, params)
    assert y.shape == (batch,)
    assert jnp.allclose(y, y_ref, atol=2e-2), float(jnp.max(jnp.abs(y - y_ref)))

    # Multi-tile check: exercises the grid, the remainder padding and the
    # lane-dense (G, TILE_B) output reassembly.
    batch2 = 300
    x2 = jax.random.normal(kx2, (batch2, input_dim), jnp.float32)
    y2 = jax.block_until_ready(heart_attack_mlp_forward(x2, params, tile_b=128))
    y2_ref = _reference_forward(x2, params)
    assert y2.shape == (batch2,)
    assert jnp.allclose(y2, y2_ref, atol=2e-2), float(jnp.max(jnp.abs(y2 - y2_ref)))

    print("KERNEL_OK")
</pallas_src>

<mosaic_0001>
module attributes {stable_mosaic.version = 11 : i64} {
  func.func @_mlp_kernel(%arg0: i32, %arg1: memref<256x16xbf16, #tpu.memory_space<vmem>>, %arg2: memref<16x128xbf16, #tpu.memory_space<vmem>>, %arg3: memref<1x128xf32, #tpu.memory_space<vmem>>, %arg4: memref<128x64xbf16, #tpu.memory_space<vmem>>, %arg5: memref<1x64xf32, #tpu.memory_space<vmem>>, %arg6: memref<64x32xbf16, #tpu.memory_space<vmem>>, %arg7: memref<1x32xf32, #tpu.memory_space<vmem>>, %arg8: memref<1x32xbf16, #tpu.memory_space<vmem>>, %arg9: memref<1x1xf32, #tpu.memory_space<vmem>>, %arg10: memref<1x256xf32, #tpu.memory_space<vmem>>) attributes {dimension_semantics = [#tpu.dimension_semantics<parallel>], iteration_bounds = array<i64: 1>, scalar_prefetch = 0 : i64, scratch_operands = 0 : i64, tpu.core_type = #tpu.core_type<tc>, window_params = [{transform_indices = @transform_0, window_bounds = array<i64: 256, 16>}, {pipeline_mode = #tpu.pipeline_mode<synchronous>, transform_indices = @transform_1, window_bounds = array<i64: 16, 128>}, {pipeline_mode = #tpu.pipeline_mode<synchronous>, transform_indices = @transform_2, window_bounds = array<i64: 1, 128>}, {pipeline_mode = #tpu.pipeline_mode<synchronous>, transform_indices = @transform_3, window_bounds = array<i64: 128, 64>}, {pipeline_mode = #tpu.pipeline_mode<synchronous>, transform_indices = @transform_4, window_bounds = array<i64: 1, 64>}, {pipeline_mode = #tpu.pipeline_mode<synchronous>, transform_indices = @transform_5, window_bounds = array<i64: 64, 32>}, {pipeline_mode = #tpu.pipeline_mode<synchronous>, transform_indices = @transform_6, window_bounds = array<i64: 1, 32>}, {pipeline_mode = #tpu.pipeline_mode<synchronous>, transform_indices = @transform_7, window_bounds = array<i64: 1, 32>}, {pipeline_mode = #tpu.pipeline_mode<synchronous>, transform_indices = @transform_8, window_bounds = array<i64: 1, 1>}, {transform_indices = @transform_9, window_bounds = array<i64: 1, 256>}]} {
    %c0 = arith.constant 0 : index
    %c0_0 = arith.constant 0 : index
    %0 = vector.load %arg1[%c0, %c0_0] : memref<256x16xbf16, #tpu.memory_space<vmem>>, vector<256x16xbf16>
    %c0_1 = arith.constant 0 : index
    %c0_2 = arith.constant 0 : index
    %1 = vector.load %arg2[%c0_1, %c0_2] : memref<16x128xbf16, #tpu.memory_space<vmem>>, vector<16x128xbf16>
    %cst = arith.constant dense<0.000000e+00> : vector<256x128xf32>
    %2 = tpu.matmul %0, %1, %cst {dimension_numbers = #tpu.dot_dimension_numbers<[1], [0], [0], [1], [0, 0, 1, 1], [], []>} : vector<256x16xbf16>, vector<16x128xbf16>, vector<256x128xf32> -> vector<256x128xf32>
    %c0_3 = arith.constant 0 : index
    %c0_4 = arith.constant 0 : index
    %3 = vector.load %arg3[%c0_3, %c0_4] : memref<1x128xf32, #tpu.memory_space<vmem>>, vector<1x128xf32>
    %4 = vector.broadcast %3 : vector<1x128xf32> to vector<256x128xf32>
    %5 = arith.addf %2, %4 : vector<256x128xf32>
    %cst_5 = arith.constant 0.000000e+00 : f32
    %6 = vector.broadcast %cst_5 : f32 to vector<256x128xf32>
    %7 = arith.maximumf %5, %6 : vector<256x128xf32>
    %8 = arith.truncf %7 : vector<256x128xf32> to vector<256x128xbf16>
    %c0_6 = arith.constant 0 : index
    %c0_7 = arith.constant 0 : index
    %9 = vector.load %arg4[%c0_6, %c0_7] : memref<128x64xbf16, #tpu.memory_space<vmem>>, vector<128x64xbf16>
    %cst_8 = arith.constant dense<0.000000e+00> : vector<256x64xf32>
    %10 = tpu.matmul %8, %9, %cst_8 {dimension_numbers = #tpu.dot_dimension_numbers<[1], [0], [0], [1], [0, 0, 1, 1], [], []>} : vector<256x128xbf16>, vector<128x64xbf16>, vector<256x64xf32> -> vector<256x64xf32>
    %c0_9 = arith.constant 0 : index
    %c0_10 = arith.constant 0 : index
    %11 = vector.load %arg5[%c0_9, %c0_10] : memref<1x64xf32, #tpu.memory_space<vmem>>, vector<1x64xf32>
    %12 = vector.broadcast %11 : vector<1x64xf32> to vector<256x64xf32>
    %13 = arith.addf %10, %12 : vector<256x64xf32>
    %cst_11 = arith.constant 0.000000e+00 : f32
    %14 = vector.broadcast %cst_11 : f32 to vector<256x64xf32>
    %15 = arith.maximumf %13, %14 : vector<256x64xf32>
    %16 = arith.truncf %15 : vector<256x64xf32> to vector<256x64xbf16>
    %c0_12 = arith.constant 0 : index
    %c0_13 = arith.constant 0 : index
    %17 = vector.load %arg6[%c0_12, %c0_13] : memref<64x32xbf16, #tpu.memory_space<vmem>>, vector<64x32xbf16>
    %cst_14 = arith.constant dense<0.000000e+00> : vector<256x32xf32>
    %18 = tpu.matmul %16, %17, %cst_14 {dimension_numbers = #tpu.dot_dimension_numbers<[1], [0], [0], [1], [0, 0, 1, 1], [], []>} : vector<256x64xbf16>, vector<64x32xbf16>, vector<256x32xf32> -> vector<256x32xf32>
    %c0_15 = arith.constant 0 : index
    %c0_16 = arith.constant 0 : index
    %19 = vector.load %arg7[%c0_15, %c0_16] : memref<1x32xf32, #tpu.memory_space<vmem>>, vector<1x32xf32>
    %20 = vector.broadcast %19 : vector<1x32xf32> to vector<256x32xf32>
    %21 = arith.addf %18, %20 : vector<256x32xf32>
    %cst_17 = arith.constant 0.000000e+00 : f32
    %22 = vector.broadcast %cst_17 : f32 to vector<256x32xf32>
    %23 = arith.maximumf %21, %22 : vector<256x32xf32>
    %24 = arith.truncf %23 : vector<256x32xf32> to vector<256x32xbf16>
    %c0_18 = arith.constant 0 : index
    %c0_19 = arith.constant 0 : index
    %25 = vector.load %arg8[%c0_18, %c0_19] : memref<1x32xbf16, #tpu.memory_space<vmem>>, vector<1x32xbf16>
    %cst_20 = arith.constant dense<0.000000e+00> : vector<1x256xf32>
    %26 = tpu.matmul %25, %24, %cst_20 {dimension_numbers = #tpu.dot_dimension_numbers<[1], [1], [0], [0], [0, 0, 1, 0], [], []>} : vector<1x32xbf16>, vector<256x32xbf16>, vector<1x256xf32> -> vector<1x256xf32>
    %c0_21 = arith.constant 0 : index
    %c0_22 = arith.constant 0 : index
    %27 = vector.load %arg9[%c0_21, %c0_22] : memref<1x1xf32, #tpu.memory_space<vmem>>, vector<1x1xf32>
    %28 = vector.broadcast %27 : vector<1x1xf32> to vector<1x256xf32>
    %29 = arith.addf %26, %28 : vector<1x256xf32>
    %30 = arith.negf %29 : vector<1x256xf32>
    %31 = math.exp %30 : vector<1x256xf32>
    %cst_23 = arith.constant 1.000000e+00 : f32
    %32 = vector.broadcast %cst_23 : f32 to vector<1x256xf32>
    %33 = arith.addf %32, %31 : vector<1x256xf32>
    %34 = arith.divf %32, %33 : vector<1x256xf32>
    %c0_24 = arith.constant 0 : index
    %c0_25 = arith.constant 0 : index
    %35 = vector.load %arg10[%c0_24, %c0_25] : memref<1x256xf32, #tpu.memory_space<vmem>>, vector<1x256xf32>
    tpu.vector_store %arg10[%c0_24, %c0_25], %34 {strides = array<i32>} : memref<1x256xf32, #tpu.memory_space<vmem>>, vector<1x256xf32>,
    return
  }
  func.func @transform_0(%arg0: i32) -> (i32, i32) {
    %c0_i32 = arith.constant 0 : i32
    %c0_i32_0 = arith.constant 0 : i32
    return %arg0, %c0_i32 : i32, i32
  }
  func.func @transform_1(%arg0: i32) -> (i32, i32) {
    %c0_i32 = arith.constant 0 : i32
    %c0_i32_0 = arith.constant 0 : i32
    %c0_i32_1 = arith.constant 0 : i32
    return %c0_i32, %c0_i32_0 : i32, i32
  }
  func.func @transform_2(%arg0: i32) -> (i32, i32) {
    %c0_i32 = arith.constant 0 : i32
    %c0_i32_0 = arith.constant 0 : i32
    %c0_i32_1 = arith.constant 0 : i32
    return %c0_i32, %c0_i32_0 : i32, i32
  }
  func.func @transform_3(%arg0: i32) -> (i32, i32) {
    %c0_i32 = arith.constant 0 : i32
    %c0_i32_0 = arith.constant 0 : i32
    %c0_i32_1 = arith.constant 0 : i32
    return %c0_i32, %c0_i32_0 : i32, i32
  }
  func.func @transform_4(%arg0: i32) -> (i32, i32) {
    %c0_i32 = arith.constant 0 : i32
    %c0_i32_0 = arith.constant 0 : i32
    %c0_i32_1 = arith.constant 0 : i32
    return %c0_i32, %c0_i32_0 : i32, i32
  }
  func.func @transform_5(%arg0: i32) -> (i32, i32) {
    %c0_i32 = arith.constant 0 : i32
    %c0_i32_0 = arith.constant 0 : i32
    %c0_i32_1 = arith.constant 0 : i32
    return %c0_i32, %c0_i32_0 : i32, i32
  }
  func.func @transform_6(%arg0: i32) -> (i32, i32) {
    %c0_i32 = arith.constant 0 : i32
    %c0_i32_0 = arith.constant 0 : i32
    %c0_i32_1 = arith.constant 0 : i32
    return %c0_i32, %c0_i32_0 : i32, i32
  }
  func.func @transform_7(%arg0: i32) -> (i32, i32) {
    %c0_i32 = arith.constant 0 : i32
    %c0_i32_0 = arith.constant 0 : i32
    %c0_i32_1 = arith.constant 0 : i32
    return %c0_i32, %c0_i32_0 : i32, i32
  }
  func.func @transform_8(%arg0: i32) -> (i32, i32) {
    %c0_i32 = arith.constant 0 : i32
    %c0_i32_0 = arith.constant 0 : i32
    %c0_i32_1 = arith.constant 0 : i32
    return %c0_i32, %c0_i32_0 : i32, i32
  }
  func.func @transform_9(%arg0: i32) -> (i32, i32) {
    %c0_i32 = arith.constant 0 : i32
    %c0_i32_0 = arith.constant 0 : i32
    return %arg0, %c0_i32 : i32, i32
  }
}

</mosaic_0001>

<llo_original>
// kernel: tpu_custom_call.1
$region0: #{tpu_custom_call.1}
  #allocation0 [shape = 'u32[]', space=smem, size = 0x4, offset = 0x4, fixed_abs, tag = 'smem constant byte address 0x4 - core index']
  #allocation1 [shape = 'u32[72,128]{1,0:T(1,128)}', space=vmem, size = 0x9000, scoped, tag = 'internal scratch']
  #allocation2 [shape = 'f32[1,1]{1,0:T(1,128)S(1)}', space=vmem, size = 0x200, scoped, tag = 'scoped memory for tpu_custom_call.1']
  %s0 = inlined_call_operand.vmem [shape: bf16[256,16], index: 0, kind: input, shape index: {}]
  %s1 = inlined_call_operand.vmem [shape: bf16[16,128], index: 1, kind: input, shape index: {}]
  %s2 = inlined_call_operand.vmem [shape: f32[1,128], index: 2, kind: input, shape index: {}]
  %s3 = inlined_call_operand.vmem [shape: bf16[128,64], index: 3, kind: input, shape index: {}]
  %s4 = inlined_call_operand.vmem [shape: f32[1,64], index: 4, kind: input, shape index: {}]
  %s5 = inlined_call_operand.vmem [shape: bf16[64,32], index: 5, kind: input, shape index: {}]
  %s6 = inlined_call_operand.vmem [shape: f32[1,32], index: 6, kind: input, shape index: {}]
  %s7 = inlined_call_operand.vmem [shape: bf16[1,32], index: 7, kind: input, shape index: {}]
  %s8 = inlined_call_operand.<no memory space> [shape: f32[1,1], index: 8, kind: input, shape index: {}]
  %s9 = inlined_call_operand.hbm [shape: f32[1,256], index: 9, kind: output, shape index: {}]
  %s10 = sld [smem:[#allocation0]]
  $region46: #{tpu_custom_call.1} parent=0
    _
  %s12 = ssub.s32 1, %s10
  %s13 = scalar_select 0, %s12, %s10
  %v14 = vstv %s8
  %15 = vst [vmem:[#allocation2] sm:$0x1] %v14
  $region1: #{tpu_custom_call.1} parent=0
    #allocation3 [shape = 'u8[1024]{0}', space=vmem, size = 0x400, scoped, tag = 'output window, operand 0, single buffered']
    #allocation4 [shape = 's32[1]{0}', space=sflag, size = 0x4, scoped, tag = 'scoped memory for tpu_custom_call.1']
    %16 = vsyncpa [#allocation4], 0
    // Predicated region
    $region2: #{tpu_custom_call.1} parent=1 // pred_check
      _
    $region3: #{tpu_custom_call.1} parent=1 // pred_check_branch
      %18 = sbr.rel (0) target = $region5
    $region4: #{tpu_custom_call.1} parent=1 // pred_region
      _
    $region5: #{tpu_custom_call.1} parent=1 // pred_fallthru
      _
    // Predicated region
    $region6: #{tpu_custom_call.1} parent=1 // pred_check
      _
    $region7: #{tpu_custom_call.1} parent=1 // pred_check_branch
      %20 = sbr.rel (0) target = $region9
    $region8: #{tpu_custom_call.1} parent=1 // pred_region
      _
    $region9: #{tpu_custom_call.1} parent=1 // pred_fallthru
      _
    // Predicated region
    $region10: #{tpu_custom_call.1} parent=1 // pred_check
      _
    $region11: #{tpu_custom_call.1} parent=1 // pred_check_branch
      %22 = sbr.rel (0) target = $region13
    $region12: #{tpu_custom_call.1} parent=1 // pred_region
      _
    $region13: #{tpu_custom_call.1} parent=1 // pred_fallthru
      _
    // Predicated region
    $region14: #{tpu_custom_call.1} parent=1 // pred_check
      _
    $region15: #{tpu_custom_call.1} parent=1 // pred_check_branch
      %24 = sbr.rel (0) target = $region17
    $region16: #{tpu_custom_call.1} parent=1 // pred_region
      _
    $region17: #{tpu_custom_call.1} parent=1 // pred_fallthru
      _
    // Predicated region
    $region18: #{tpu_custom_call.1} parent=1 // pred_check
      _
    $region19: #{tpu_custom_call.1} parent=1 // pred_check_branch
      %26 = sbr.rel (0) target = $region21
    $region20: #{tpu_custom_call.1} parent=1 // pred_region
      _
    $region21: #{tpu_custom_call.1} parent=1 // pred_fallthru
      _
    // Predicated region
    $region22: #{tpu_custom_call.1} parent=1 // pred_check
      _
    $region23: #{tpu_custom_call.1} parent=1 // pred_check_branch
      %28 = sbr.rel (0) target = $region25
    $region24: #{tpu_custom_call.1} parent=1 // pred_region
      _
    $region25: #{tpu_custom_call.1} parent=1 // pred_fallthru
      _
    // Predicated region
    $region26: #{tpu_custom_call.1} parent=1 // pred_check
      _
    $region27: #{tpu_custom_call.1} parent=1 // pred_check_branch
      %30 = sbr.rel (0) target = $region29
    $region28: #{tpu_custom_call.1} parent=1 // pred_region
      _
    $region29: #{tpu_custom_call.1} parent=1 // pred_fallthru
      _
    // Predicated region
    $region30: #{tpu_custom_call.1} parent=1 // pred_check
      _
    $region31: #{tpu_custom_call.1} parent=1 // pred_check_branch
      %32 = sbr.rel (0) target = $region33
    $region32: #{tpu_custom_call.1} parent=1 // pred_region
      _
    $region33: #{tpu_custom_call.1} parent=1 // pred_fallthru
      _
    // Predicated region
    $region34: #{tpu_custom_call.1} parent=1 // pred_check
      _
    $region35: #{tpu_custom_call.1} parent=1 // pred_check_branch
      %34 = sbr.rel (0) target = $region37
    $region36: #{tpu_custom_call.1} parent=1 // pred_region
      _
    $region37: #{tpu_custom_call.1} parent=1 // pred_fallthru
      _
    %v36 = vld [vmem:[%s0] sm:$0xf]
    %v37 = vld [vmem:[%s0 + $0x4] sm:$0xf]
    %v38 = vld [vmem:[%s0 + $0x8] sm:$0xf]
    %v39 = vld [vmem:[%s0 + $0xc] sm:$0xf]
    %v40 = vld [vmem:[%s0 + $0x10] sm:$0xf]
    %v41 = vld [vmem:[%s0 + $0x14] sm:$0xf]
    %v42 = vld [vmem:[%s0 + $0x18] sm:$0xf]
    %v43 = vld [vmem:[%s0 + $0x1c] sm:$0xf]
    %v44 = vld [vmem:[%s0 + $0x20] sm:$0xf]
    %v45 = vld [vmem:[%s0 + $0x24] sm:$0xf]
    %v46 = vld [vmem:[%s0 + $0x28] sm:$0xf]
    %v47 = vld [vmem:[%s0 + $0x2c] sm:$0xf]
    %v48 = vld [vmem:[%s0 + $0x30] sm:$0xf]
    %v49 = vld [vmem:[%s0 + $0x34] sm:$0xf]
    %v50 = vld [vmem:[%s0 + $0x38] sm:$0xf]
    %v51 = vld [vmem:[%s0 + $0x3c] sm:$0xf]
    %v52 = vld [vmem:[%s0 + $0x40] sm:$0xf]
    %v53 = vld [vmem:[%s0 + $0x44] sm:$0xf]
    %v54 = vld [vmem:[%s0 + $0x48] sm:$0xf]
    %v55 = vld [vmem:[%s0 + $0x4c] sm:$0xf]
    %v56 = vld [vmem:[%s0 + $0x50] sm:$0xf]
    %v57 = vld [vmem:[%s0 + $0x54] sm:$0xf]
    %v58 = vld [vmem:[%s0 + $0x58] sm:$0xf]
    %v59 = vld [vmem:[%s0 + $0x5c] sm:$0xf]
    %v60 = vld [vmem:[%s0 + $0x60] sm:$0xf]
    %v61 = vld [vmem:[%s0 + $0x64] sm:$0xf]
    %v62 = vld [vmem:[%s0 + $0x68] sm:$0xf]
    %v63 = vld [vmem:[%s0 + $0x6c] sm:$0xf]
    %v64 = vld [vmem:[%s0 + $0x70] sm:$0xf]
    %v65 = vld [vmem:[%s0 + $0x74] sm:$0xf]
    %v66 = vld [vmem:[%s0 + $0x78] sm:$0xf]
    %v67 = vld [vmem:[%s0 + $0x7c] sm:$0xf]
    %v68 = vld [vmem:[%s1] sm:$0xf]
    %v69 = vld [vmem:[%s1 + $0x4] sm:$0xf]
    %v70 = vld [vmem:[%s2] sm:$0x1]
    %v72 = vperm.slane %v70, 0
    %v106 = vunpack.c.l.b16 %v36
    %v107 = vunpack.c.l.b16 %v37
    %v108 = vunpack.c.l.b16 %v38
    %v109 = vunpack.c.l.b16 %v39
    %v110 = vunpack.c.l.b16 %v40
    %v111 = vunpack.c.l.b16 %v41
    %v112 = vunpack.c.l.b16 %v42
    %v113 = vunpack.c.l.b16 %v43
    %v114 = vunpack.c.l.b16 %v44
    %v115 = vunpack.c.l.b16 %v45
    %v116 = vunpack.c.l.b16 %v46
    %v117 = vunpack.c.l.b16 %v47
    %v118 = vunpack.c.l.b16 %v48
    %v119 = vunpack.c.l.b16 %v49
    %v120 = vunpack.c.l.b16 %v50
    %v121 = vunpack.c.l.b16 %v51
    %v122 = vunpack.c.l.b16 %v52
    %v123 = vunpack.c.l.b16 %v53
    %v124 = vunpack.c.l.b16 %v54
    %v125 = vunpack.c.l.b16 %v55
    %v126 = vunpack.c.l.b16 %v56
    %v127 = vunpack.c.l.b16 %v57
    %v128 = vunpack.c.l.b16 %v58
    %v129 = vunpack.c.l.b16 %v59
    %v130 = vunpack.c.l.b16 %v60
    %v131 = vunpack.c.l.b16 %v61
    %v132 = vunpack.c.l.b16 %v62
    %v133 = vunpack.c.l.b16 %v63
    %v134 = vunpack.c.l.b16 %v64
    %v135 = vunpack.c.l.b16 %v65
    %v136 = vunpack.c.l.b16 %v66
    %v137 = vunpack.c.l.b16 %v67
    %v138 = vpack.c.b16 %v107, %v106
    %v139 = vpack.c.b16 %v109, %v108
    %v140 = vpack.c.b16 %v111, %v110
    %v141 = vpack.c.b16 %v113, %v112
    %v142 = vpack.c.b16 %v115, %v114
    %v143 = vpack.c.b16 %v117, %v116
    %v144 = vpack.c.b16 %v119, %v118
    %v145 = vpack.c.b16 %v121, %v120
    %v146 = vpack.c.b16 %v123, %v122
    %v147 = vpack.c.b16 %v125, %v124
    %v148 = vpack.c.b16 %v127, %v126
    %v149 = vpack.c.b16 %v129, %v128
    %v150 = vpack.c.b16 %v131, %v130
    %v151 = vpack.c.b16 %v133, %v132
    %v152 = vpack.c.b16 %v135, %v134
    %v153 = vpack.c.b16 %v137, %v136
    %v156 = vunpack.c.l.b16 %v68
    %v157 = vunpack.c.l.b16 %v69
    %v158 = vpack.c.b16 %v157, %v156
    %vm160 = vcmask 130048
    %v162 = vsel %vm160, %v138, 0
    %v165 = vsel %vm160, %v139, 0
    %v168 = vsel %vm160, %v140, 0
    %v171 = vsel %vm160, %v141, 0
    %v174 = vsel %vm160, %v142, 0
    %v177 = vsel %vm160, %v143, 0
    %v180 = vsel %vm160, %v144, 0
    %v183 = vsel %vm160, %v145, 0
    %v186 = vsel %vm160, %v146, 0
    %v189 = vsel %vm160, %v147, 0
    %v192 = vsel %vm160, %v148, 0
    %v195 = vsel %vm160, %v149, 0
    %v198 = vsel %vm160, %v150, 0
    %v201 = vsel %vm160, %v151, 0
    %v204 = vsel %vm160, %v152, 0
    %v207 = vsel %vm160, %v153, 0
    %209 = vmatpush.bf16.msra.mxu0 0
    %210 = vmatpush.bf16.msra.mxu0 0
    %211 = vmatpush.bf16.msra.mxu0 0
    %212 = vmatpush.bf16.msra.mxu0 0
    %213 = vmatpush.bf16.msra.mxu0 0
    %214 = vmatpush.bf16.msra.mxu0 0
    %215 = vmatpush.bf16.msra.mxu0 0
    %216 = vmatpush.bf16.msra.mxu0 %v158
    %217 = vmatmul.bf16.gmra.mxu0 %v162
    %v218 = vpop.f32.mrf.mxu0
    %v219 = vadd.f32 %v72, %v218
    %v220 = vpop.f32.mrf.mxu0
    %v221 = vadd.f32 %v72, %v220
    %222 = vmatmul.bf16.gmra.mxu0 %v165
    %v223 = vpop.f32.mrf.mxu0
    %v224 = vadd.f32 %v72, %v223
    %v225 = vpop.f32.mrf.mxu0
    %v226 = vadd.f32 %v72, %v225
    %227 = vmatmul.bf16.gmra.mxu0 %v168
    %v228 = vpop.f32.mrf.mxu0
    %v229 = vadd.f32 %v72, %v228
    %v230 = vpop.f32.mrf.mxu0
    %v231 = vadd.f32 %v72, %v230
    %232 = vmatmul.bf16.gmra.mxu0 %v171
    %v233 = vpop.f32.mrf.mxu0
    %v234 = vadd.f32 %v72, %v233
    %v235 = vpop.f32.mrf.mxu0
    %v236 = vadd.f32 %v72, %v235
    %237 = vmatmul.bf16.gmra.mxu0 %v174
    %v238 = vpop.f32.mrf.mxu0
    %v239 = vadd.f32 %v72, %v238
    %v240 = vpop.f32.mrf.mxu0
    %v241 = vadd.f32 %v72, %v240
    %242 = vmatmul.bf16.gmra.mxu0 %v177
    %v243 = vpop.f32.mrf.mxu0
    %v244 = vadd.f32 %v72, %v243
    %v245 = vpop.f32.mrf.mxu0
    %v246 = vadd.f32 %v72, %v245
    %247 = vmatmul.bf16.gmra.mxu0 %v180
    %v248 = vpop.f32.mrf.mxu0
    %v249 = vadd.f32 %v72, %v248
    %v250 = vpop.f32.mrf.mxu0
    %v251 = vadd.f32 %v72, %v250
    %252 = vmatmul.bf16.gmra.mxu0 %v183
    %v253 = vpop.f32.mrf.mxu0
    %v254 = vadd.f32 %v72, %v253
    %v255 = vpop.f32.mrf.mxu0
    %v256 = vadd.f32 %v72, %v255
    %257 = vmatmul.bf16.gmra.mxu0 %v186
    %v258 = vpop.f32.mrf.mxu0
    %v259 = vadd.f32 %v72, %v258
    %v260 = vpop.f32.mrf.mxu0
    %v261 = vadd.f32 %v72, %v260
    %262 = vmatmul.bf16.gmra.mxu0 %v189
    %v263 = vpop.f32.mrf.mxu0
    %v264 = vadd.f32 %v72, %v263
    %v265 = vpop.f32.mrf.mxu0
    %v266 = vadd.f32 %v72, %v265
    %267 = vmatmul.bf16.gmra.mxu0 %v192
    %v268 = vpop.f32.mrf.mxu0
    %v269 = vadd.f32 %v72, %v268
    %v270 = vpop.f32.mrf.mxu0
    %v271 = vadd.f32 %v72, %v270
    %272 = vmatmul.bf16.gmra.mxu0 %v195
    %v273 = vpop.f32.mrf.mxu0
    %v274 = vadd.f32 %v72, %v273
    %v275 = vpop.f32.mrf.mxu0
    %v276 = vadd.f32 %v72, %v275
    %277 = vmatmul.bf16.gmra.mxu0 %v198
    %v278 = vpop.f32.mrf.mxu0
    %v279 = vadd.f32 %v72, %v278
    %v280 = vpop.f32.mrf.mxu0
    %v281 = vadd.f32 %v72, %v280
    %282 = vmatmul.bf16.gmra.mxu0 %v201
    %v283 = vpop.f32.mrf.mxu0
    %v284 = vadd.f32 %v72, %v283
    %v285 = vpop.f32.mrf.mxu0
    %v286 = vadd.f32 %v72, %v285
    %287 = vmatmul.bf16.gmra.mxu0 %v204
    %v288 = vpop.f32.mrf.mxu0
    %v289 = vadd.f32 %v72, %v288
    %v290 = vpop.f32.mrf.mxu0
    %v291 = vadd.f32 %v72, %v290
    %292 = vmatmul.bf16.gmra.mxu0 %v207
    %v293 = vpop.f32.mrf.mxu0
    %v294 = vadd.f32 %v72, %v293
    %v295 = vpop.f32.mrf.mxu0
    %v296 = vadd.f32 %v72, %v295
    %297 = vdwg.mxu0
    %v298 = vmax.f32 %v219, 0.0
    %v299 = vmax.f32 %v221, 0.0
    %v300 = vmax.f32 %v224, 0.0
    %v301 = vmax.f32 %v226, 0.0
    %v302 = vmax.f32 %v229, 0.0
    %v303 = vmax.f32 %v231, 0.0
    %v304 = vmax.f32 %v234, 0.0
    %v305 = vmax.f32 %v236, 0.0
    %v306 = vmax.f32 %v239, 0.0
    %v307 = vmax.f32 %v241, 0.0
    %v308 = vmax.f32 %v244, 0.0
    %v309 = vmax.f32 %v246, 0.0
    %v310 = vmax.f32 %v249, 0.0
    %v311 = vmax.f32 %v251, 0.0
    %v312 = vmax.f32 %v254, 0.0
    %v313 = vmax.f32 %v256, 0.0
    %v314 = vmax.f32 %v259, 0.0
    %v315 = vmax.f32 %v261, 0.0
    %v316 = vmax.f32 %v264, 0.0
    %v317 = vmax.f32 %v266, 0.0
    %v318 = vmax.f32 %v269, 0.0
    %v319 = vmax.f32 %v271, 0.0
    %v320 = vmax.f32 %v274, 0.0
    %v321 = vmax.f32 %v276, 0.0
    %v322 = vmax.f32 %v279, 0.0
    %v323 = vmax.f32 %v281, 0.0
    %v324 = vmax.f32 %v284, 0.0
    %v325 = vmax.f32 %v286, 0.0
    %v326 = vmax.f32 %v289, 0.0
    %v327 = vmax.f32 %v291, 0.0
    %v328 = vmax.f32 %v294, 0.0
    %v329 = vmax.f32 %v296, 0.0
    %v330 = vpack.c.bf16 %v299, %v298
    %v331 = vpack.c.bf16 %v301, %v300
    %v332 = vpack.c.bf16 %v303, %v302
    %v333 = vpack.c.bf16 %v305, %v304
    %v334 = vpack.c.bf16 %v307, %v306
    %v335 = vpack.c.bf16 %v309, %v308
    %v336 = vpack.c.bf16 %v311, %v310
    %v337 = vpack.c.bf16 %v313, %v312
    %v338 = vpack.c.bf16 %v315, %v314
    %v339 = vpack.c.bf16 %v317, %v316
    %v340 = vpack.c.bf16 %v319, %v318
    %v341 = vpack.c.bf16 %v321, %v320
    %v342 = vpack.c.bf16 %v323, %v322
    %v343 = vpack.c.bf16 %v325, %v324
    %v344 = vpack.c.bf16 %v327, %v326
    %v345 = vpack.c.bf16 %v329, %v328
    %v346 = vld [vmem:[%s3] sm:$0xf]
    %v347 = vld [vmem:[%s3 + $0x4] sm:$0xf]
    %v348 = vld [vmem:[%s3 + $0x8] sm:$0xf]
    %v349 = vld [vmem:[%s3 + $0xc] sm:$0xf]
    %v350 = vld [vmem:[%s3 + $0x10] sm:$0xf]
    %v351 = vld [vmem:[%s3 + $0x14] sm:$0xf]
    %v352 = vld [vmem:[%s3 + $0x18] sm:$0xf]
    %v353 = vld [vmem:[%s3 + $0x1c] sm:$0xf]
    %v354 = vld [vmem:[%s3 + $0x20] sm:$0xf]
    %v355 = vld [vmem:[%s3 + $0x24] sm:$0xf]
    %v356 = vld [vmem:[%s3 + $0x28] sm:$0xf]
    %v357 = vld [vmem:[%s3 + $0x2c] sm:$0xf]
    %v358 = vld [vmem:[%s3 + $0x30] sm:$0xf]
    %v359 = vld [vmem:[%s3 + $0x34] sm:$0xf]
    %v360 = vld [vmem:[%s3 + $0x38] sm:$0xf]
    %v361 = vld [vmem:[%s3 + $0x3c] sm:$0xf]
    %v362 = vld [vmem:[%s4] sm:$0x1]
    %v364 = vperm.slane %v362, 0
    %v382 = vunpack.c.l.b16 %v346
    %v383 = vunpack.c.l.b16 %v347
    %v384 = vunpack.c.l.b16 %v348
    %v385 = vunpack.c.l.b16 %v349
    %v386 = vunpack.c.l.b16 %v350
    %v387 = vunpack.c.l.b16 %v351
    %v388 = vunpack.c.l.b16 %v352
    %v389 = vunpack.c.l.b16 %v353
    %v390 = vunpack.c.l.b16 %v354
    %v391 = vunpack.c.l.b16 %v355
    %v392 = vunpack.c.l.b16 %v356
    %v393 = vunpack.c.l.b16 %v357
    %v394 = vunpack.c.l.b16 %v358
    %v395 = vunpack.c.l.b16 %v359
    %v396 = vunpack.c.l.b16 %v360
    %v397 = vunpack.c.l.b16 %v361
    %v398 = vpack.c.b16 %v383, %v382
    %v399 = vpack.c.b16 %v385, %v384
    %v400 = vpack.c.b16 %v387, %v386
    %v401 = vpack.c.b16 %v389, %v388
    %v402 = vpack.c.b16 %v391, %v390
    %v403 = vpack.c.b16 %v393, %v392
    %v404 = vpack.c.b16 %v395, %v394
    %v405 = vpack.c.b16 %v397, %v396
    %414 = vmatpush.bf16.msra.mxu0 %v405
    %415 = vmatpush.bf16.msra.mxu0 %v404
    %416 = vmatpush.bf16.msra.mxu0 %v403
    %417 = vmatpush.bf16.msra.mxu0 %v402
    %418 = vmatpush.bf16.msra.mxu0 %v401
    %419 = vmatpush.bf16.msra.mxu0 %v400
    %420 = vmatpush.bf16.msra.mxu0 %v399
    %421 = vmatpush.bf16.msra.mxu0 %v398
    %422 = vmatmul.bf16.gmra.mxu0 %v330
    %v423 = vpop.f32.mrf.mxu0
    %v424 = vadd.f32 %v364, %v423
    %v425 = vpop.f32.mrf.mxu0
    %v426 = vadd.f32 %v364, %v425
    %427 = vmatmul.bf16.gmra.mxu0 %v331
    %v428 = vpop.f32.mrf.mxu0
    %v429 = vadd.f32 %v364, %v428
    %v430 = vpop.f32.mrf.mxu0
    %v431 = vadd.f32 %v364, %v430
    %432 = vmatmul.bf16.gmra.mxu0 %v332
    %v433 = vpop.f32.mrf.mxu0
    %v434 = vadd.f32 %v364, %v433
    %v435 = vpop.f32.mrf.mxu0
    %v436 = vadd.f32 %v364, %v435
    %437 = vmatmul.bf16.gmra.mxu0 %v333
    %v438 = vpop.f32.mrf.mxu0
    %v439 = vadd.f32 %v364, %v438
    %v440 = vpop.f32.mrf.mxu0
    %v441 = vadd.f32 %v364, %v440
    %442 = vmatmul.bf16.gmra.mxu0 %v334
    %v443 = vpop.f32.mrf.mxu0
    %v444 = vadd.f32 %v364, %v443
    %v445 = vpop.f32.mrf.mxu0
    %v446 = vadd.f32 %v364, %v445
    %447 = vmatmul.bf16.gmra.mxu0 %v335
    %v448 = vpop.f32.mrf.mxu0
    %v449 = vadd.f32 %v364, %v448
    %v450 = vpop.f32.mrf.mxu0
    %v451 = vadd.f32 %v364, %v450
    %452 = vmatmul.bf16.gmra.mxu0 %v336
    %v453 = vpop.f32.mrf.mxu0
    %v454 = vadd.f32 %v364, %v453
    %v455 = vpop.f32.mrf.mxu0
    %v456 = vadd.f32 %v364, %v455
    %457 = vmatmul.bf16.gmra.mxu0 %v337
    %v458 = vpop.f32.mrf.mxu0
    %v459 = vadd.f32 %v364, %v458
    %v460 = vpop.f32.mrf.mxu0
    %v461 = vadd.f32 %v364, %v460
    %462 = vmatmul.bf16.gmra.mxu0 %v338
    %v463 = vpop.f32.mrf.mxu0
    %v464 = vadd.f32 %v364, %v463
    %v465 = vpop.f32.mrf.mxu0
    %v466 = vadd.f32 %v364, %v465
    %467 = vmatmul.bf16.gmra.mxu0 %v339
    %v468 = vpop.f32.mrf.mxu0
    %v469 = vadd.f32 %v364, %v468
    %v470 = vpop.f32.mrf.mxu0
    %v471 = vadd.f32 %v364, %v470
    %472 = vmatmul.bf16.gmra.mxu0 %v340
    %v473 = vpop.f32.mrf.mxu0
    %v474 = vadd.f32 %v364, %v473
    %v475 = vpop.f32.mrf.mxu0
    %v476 = vadd.f32 %v364, %v475
    %477 = vmatmul.bf16.gmra.mxu0 %v341
    %v478 = vpop.f32.mrf.mxu0
    %v479 = vadd.f32 %v364, %v478
    %v480 = vpop.f32.mrf.mxu0
    %v481 = vadd.f32 %v364, %v480
    %482 = vmatmul.bf16.gmra.mxu0 %v342
    %v483 = vpop.f32.mrf.mxu0
    %v484 = vadd.f32 %v364, %v483
    %v485 = vpop.f32.mrf.mxu0
    %v486 = vadd.f32 %v364, %v485
    %487 = vmatmul.bf16.gmra.mxu0 %v343
    %v488 = vpop.f32.mrf.mxu0
    %v489 = vadd.f32 %v364, %v488
    %v490 = vpop.f32.mrf.mxu0
    %v491 = vadd.f32 %v364, %v490
    %492 = vmatmul.bf16.gmra.mxu0 %v344
    %v493 = vpop.f32.mrf.mxu0
    %v494 = vadd.f32 %v364, %v493
    %v495 = vpop.f32.mrf.mxu0
    %v496 = vadd.f32 %v364, %v495
    %497 = vmatmul.bf16.gmra.mxu0 %v345
    %v498 = vpop.f32.mrf.mxu0
    %v499 = vadd.f32 %v364, %v498
    %v500 = vpop.f32.mrf.mxu0
    %v501 = vadd.f32 %v364, %v500
    %502 = vdwg.mxu0
    %v503 = vmax.f32 %v424, 0.0
    %v504 = vmax.f32 %v426, 0.0
    %v505 = vmax.f32 %v429, 0.0
    %v506 = vmax.f32 %v431, 0.0
    %v507 = vmax.f32 %v434, 0.0
    %v508 = vmax.f32 %v436, 0.0
    %v509 = vmax.f32 %v439, 0.0
    %v510 = vmax.f32 %v441, 0.0
    %v511 = vmax.f32 %v444, 0.0
    %v512 = vmax.f32 %v446, 0.0
    %v513 = vmax.f32 %v449, 0.0
    %v514 = vmax.f32 %v451, 0.0
    %v515 = vmax.f32 %v454, 0.0
    %v516 = vmax.f32 %v456, 0.0
    %v517 = vmax.f32 %v459, 0.0
    %v518 = vmax.f32 %v461, 0.0
    %v519 = vmax.f32 %v464, 0.0
    %v520 = vmax.f32 %v466, 0.0
    %v521 = vmax.f32 %v469, 0.0
    %v522 = vmax.f32 %v471, 0.0
    %v523 = vmax.f32 %v474, 0.0
    %v524 = vmax.f32 %v476, 0.0
    %v525 = vmax.f32 %v479, 0.0
    %v526 = vmax.f32 %v481, 0.0
    %v527 = vmax.f32 %v484, 0.0
    %v528 = vmax.f32 %v486, 0.0
    %v529 = vmax.f32 %v489, 0.0
    %v530 = vmax.f32 %v491, 0.0
    %v531 = vmax.f32 %v494, 0.0
    %v532 = vmax.f32 %v496, 0.0
    %v533 = vmax.f32 %v499, 0.0
    %v534 = vmax.f32 %v501, 0.0
    %v535 = vpack.c.bf16 %v504, %v503
    %v536 = vpack.c.bf16 %v506, %v505
    %v537 = vpack.c.bf16 %v508, %v507
    %v538 = vpack.c.bf16 %v510, %v509
    %v539 = vpack.c.bf16 %v512, %v511
    %v540 = vpack.c.bf16 %v514, %v513
    %v541 = vpack.c.bf16 %v516, %v515
    %v542 = vpack.c.bf16 %v518, %v517
    %v543 = vpack.c.bf16 %v520, %v519
    %v544 = vpack.c.bf16 %v522, %v521
    %v545 = vpack.c.bf16 %v524, %v523
    %v546 = vpack.c.bf16 %v526, %v525
    %v547 = vpack.c.bf16 %v528, %v527
    %v548 = vpack.c.bf16 %v530, %v529
    %v549 = vpack.c.bf16 %v532, %v531
    %v550 = vpack.c.bf16 %v534, %v533
    %v551 = vld [vmem:[%s5] sm:$0xf]
    %v552 = vld [vmem:[%s5 + $0x4] sm:$0xf]
    %v553 = vld [vmem:[%s5 + $0x8] sm:$0xf]
    %v554 = vld [vmem:[%s5 + $0xc] sm:$0xf]
    %v555 = vld [vmem:[%s5 + $0x10] sm:$0xf]
    %v556 = vld [vmem:[%s5 + $0x14] sm:$0xf]
    %v557 = vld [vmem:[%s5 + $0x18] sm:$0xf]
    %v558 = vld [vmem:[%s5 + $0x1c] sm:$0xf]
    %v559 = vld [vmem:[%s6] sm:$0x1]
    %v561 = vperm.slane %v559, 0
    %v571 = vunpack.c.l.b16 %v551
    %v572 = vunpack.c.l.b16 %v552
    %v573 = vunpack.c.l.b16 %v553
    %v574 = vunpack.c.l.b16 %v554
    %v575 = vunpack.c.l.b16 %v555
    %v576 = vunpack.c.l.b16 %v556
    %v577 = vunpack.c.l.b16 %v557
    %v578 = vunpack.c.l.b16 %v558
    %v579 = vpack.c.b16 %v572, %v571
    %v580 = vpack.c.b16 %v574, %v573
    %v581 = vpack.c.b16 %v576, %v575
    %v582 = vpack.c.b16 %v578, %v577
    %vm587 = vcmask 523264
    %v589 = vsel %vm587, %v535, 0
    %v592 = vsel %vm587, %v536, 0
    %v595 = vsel %vm587, %v537, 0
    %v598 = vsel %vm587, %v538, 0
    %v601 = vsel %vm587, %v539, 0
    %v604 = vsel %vm587, %v540, 0
    %v607 = vsel %vm587, %v541, 0
    %v610 = vsel %vm587, %v542, 0
    %v613 = vsel %vm587, %v543, 0
    %v616 = vsel %vm587, %v544, 0
    %v619 = vsel %vm587, %v545, 0
    %v622 = vsel %vm587, %v546, 0
    %v625 = vsel %vm587, %v547, 0
    %v628 = vsel %vm587, %v548, 0
    %v631 = vsel %vm587, %v549, 0
    %v634 = vsel %vm587, %v550, 0
    %636 = vmatpush.bf16.msra.mxu0 0
    %637 = vmatpush.bf16.msra.mxu0 0
    %638 = vmatpush.bf16.msra.mxu0 0
    %639 = vmatpush.bf16.msra.mxu0 0
    %640 = vmatpush.bf16.msra.mxu0 %v582
    %641 = vmatpush.bf16.msra.mxu0 %v581
    %642 = vmatpush.bf16.msra.mxu0 %v580
    %643 = vmatpush.bf16.msra.mxu0 %v579
    %644 = vmatmul.bf16.gmra.mxu0 %v589
    %v645 = vpop.f32.mrf.mxu0
    %v646 = vadd.f32 %v561, %v645
    %v647 = vpop.f32.mrf.mxu0
    %v648 = vadd.f32 %v561, %v647
    %649 = vmatmul.bf16.gmra.mxu0 %v592
    %v650 = vpop.f32.mrf.mxu0
    %v651 = vadd.f32 %v561, %v650
    %v652 = vpop.f32.mrf.mxu0
    %v653 = vadd.f32 %v561, %v652
    %654 = vmatmul.bf16.gmra.mxu0 %v595
    %v655 = vpop.f32.mrf.mxu0
    %v656 = vadd.f32 %v561, %v655
    %v657 = vpop.f32.mrf.mxu0
    %v658 = vadd.f32 %v561, %v657
    %659 = vmatmul.bf16.gmra.mxu0 %v598
    %v660 = vpop.f32.mrf.mxu0
    %v661 = vadd.f32 %v561, %v660
    %v662 = vpop.f32.mrf.mxu0
    %v663 = vadd.f32 %v561, %v662
    %664 = vmatmul.bf16.gmra.mxu0 %v601
    %v665 = vpop.f32.mrf.mxu0
    %v666 = vadd.f32 %v561, %v665
    %v667 = vpop.f32.mrf.mxu0
    %v668 = vadd.f32 %v561, %v667
    %669 = vmatmul.bf16.gmra.mxu0 %v604
    %v670 = vpop.f32.mrf.mxu0
    %v671 = vadd.f32 %v561, %v670
    %v672 = vpop.f32.mrf.mxu0
    %v673 = vadd.f32 %v561, %v672
    %674 = vmatmul.bf16.gmra.mxu0 %v607
    %v675 = vpop.f32.mrf.mxu0
    %v676 = vadd.f32 %v561, %v675
    %v677 = vpop.f32.mrf.mxu0
    %v678 = vadd.f32 %v561, %v677
    %679 = vmatmul.bf16.gmra.mxu0 %v610
    %v680 = vpop.f32.mrf.mxu0
    %v681 = vadd.f32 %v561, %v680
    %v682 = vpop.f32.mrf.mxu0
    %v683 = vadd.f32 %v561, %v682
    %684 = vmatmul.bf16.gmra.mxu0 %v613
    %v685 = vpop.f32.mrf.mxu0
    %v686 = vadd.f32 %v561, %v685
    %v687 = vpop.f32.mrf.mxu0
    %v688 = vadd.f32 %v561, %v687
    %689 = vmatmul.bf16.gmra.mxu0 %v616
    %v690 = vpop.f32.mrf.mxu0
    %v691 = vadd.f32 %v561, %v690
    %v692 = vpop.f32.mrf.mxu0
    %v693 = vadd.f32 %v561, %v692
    %694 = vmatmul.bf16.gmra.mxu0 %v619
    %v695 = vpop.f32.mrf.mxu0
    %v696 = vadd.f32 %v561, %v695
    %v697 = vpop.f32.mrf.mxu0
    %v698 = vadd.f32 %v561, %v697
    %699 = vmatmul.bf16.gmra.mxu0 %v622
    %v700 = vpop.f32.mrf.mxu0
    %v701 = vadd.f32 %v561, %v700
    %v702 = vpop.f32.mrf.mxu0
    %v703 = vadd.f32 %v561, %v702
    %704 = vmatmul.bf16.gmra.mxu0 %v625
    %v705 = vpop.f32.mrf.mxu0
    %v706 = vadd.f32 %v561, %v705
    %v707 = vpop.f32.mrf.mxu0
    %v708 = vadd.f32 %v561, %v707
    %709 = vmatmul.bf16.gmra.mxu0 %v628
    %v710 = vpop.f32.mrf.mxu0
    %v711 = vadd.f32 %v561, %v710
    %v712 = vpop.f32.mrf.mxu0
    %v713 = vadd.f32 %v561, %v712
    %714 = vmatmul.bf16.gmra.mxu0 %v631
    %v715 = vpop.f32.mrf.mxu0
    %v716 = vadd.f32 %v561, %v715
    %v717 = vpop.f32.mrf.mxu0
    %v718 = vadd.f32 %v561, %v717
    %719 = vmatmul.bf16.gmra.mxu0 %v634
    %v720 = vpop.f32.mrf.mxu0
    %v721 = vadd.f32 %v561, %v720
    %v722 = vpop.f32.mrf.mxu0
    %v723 = vadd.f32 %v561, %v722
    %724 = vdwg.mxu0
    %v725 = vmax.f32 %v646, 0.0
    %v726 = vmax.f32 %v648, 0.0
    %v727 = vmax.f32 %v651, 0.0
    %v728 = vmax.f32 %v653, 0.0
    %v729 = vmax.f32 %v656, 0.0
    %v730 = vmax.f32 %v658, 0.0
    %v731 = vmax.f32 %v661, 0.0
    %v732 = vmax.f32 %v663, 0.0
    %v733 = vmax.f32 %v666, 0.0
    %v734 = vmax.f32 %v668, 0.0
    %v735 = vmax.f32 %v671, 0.0
    %v736 = vmax.f32 %v673, 0.0
    %v737 = vmax.f32 %v676, 0.0
    %v738 = vmax.f32 %v678, 0.0
    %v739 = vmax.f32 %v681, 0.0
    %v740 = vmax.f32 %v683, 0.0
    %v741 = vmax.f32 %v686, 0.0
    %v742 = vmax.f32 %v688, 0.0
    %v743 = vmax.f32 %v691, 0.0
    %v744 = vmax.f32 %v693, 0.0
    %v745 = vmax.f32 %v696, 0.0
    %v746 = vmax.f32 %v698, 0.0
    %v747 = vmax.f32 %v701, 0.0
    %v748 = vmax.f32 %v703, 0.0
    %v749 = vmax.f32 %v706, 0.0
    %v750 = vmax.f32 %v708, 0.0
    %v751 = vmax.f32 %v711, 0.0
    %v752 = vmax.f32 %v713, 0.0
    %v753 = vmax.f32 %v716, 0.0
    %v754 = vmax.f32 %v718, 0.0
    %v755 = vmax.f32 %v721, 0.0
    %v756 = vmax.f32 %v723, 0.0
    %v757 = vpack.c.bf16 %v726, %v725
    %v758 = vpack.c.bf16 %v728, %v727
    %v759 = vpack.c.bf16 %v730, %v729
    %v760 = vpack.c.bf16 %v732, %v731
    %v761 = vpack.c.bf16 %v734, %v733
    %v762 = vpack.c.bf16 %v736, %v735
    %v763 = vpack.c.bf16 %v738, %v737
    %v764 = vpack.c.bf16 %v740, %v739
    %v765 = vpack.c.bf16 %v742, %v741
    %v766 = vpack.c.bf16 %v744, %v743
    %v767 = vpack.c.bf16 %v746, %v745
    %v768 = vpack.c.bf16 %v748, %v747
    %v769 = vpack.c.bf16 %v750, %v749
    %v770 = vpack.c.bf16 %v752, %v751
    %v771 = vpack.c.bf16 %v754, %v753
    %v772 = vpack.c.bf16 %v756, %v755
    %v773 = vld [vmem:[%s7] sm:$0x1]
    %v774 = vld [vmem:[#allocation2] sm:$0x1]
    %776 = vset.pattern.permute.xlu0 0
    %777 = vperm.xlu0 %776, %v774
    %v778 = vpop.permute.xlu0 %777
    %v780 = vperm.slane %v778, 0
    %vm781 = vcmask 261120
    %v783 = vsel %vm781, %v773, 0
    %v786 = vsel %vm781, %v757, 0
    %v789 = vsel %vm781, %v758, 0
    %v792 = vsel %vm781, %v759, 0
    %v795 = vsel %vm781, %v760, 0
    %v798 = vsel %vm781, %v761, 0
    %v801 = vsel %vm781, %v762, 0
    %v804 = vsel %vm781, %v763, 0
    %v807 = vsel %vm781, %v764, 0
    %v810 = vsel %vm781, %v765, 0
    %v813 = vsel %vm781, %v766, 0
    %v816 = vsel %vm781, %v767, 0
    %v819 = vsel %vm781, %v768, 0
    %v822 = vsel %vm781, %v769, 0
    %v825 = vsel %vm781, %v770, 0
    %v828 = vsel %vm781, %v771, 0
    %v831 = vsel %vm781, %v772, 0
    %833 = vmatpush.bf16.xpose.msra.mxu0 %v807
    %834 = vmatpush.bf16.xpose.msra.mxu0 %v804
    %835 = vmatpush.bf16.xpose.msra.mxu0 %v801
    %836 = vmatpush.bf16.xpose.msra.mxu0 %v798
    %837 = vmatpush.bf16.xpose.msra.mxu0 %v795
    %838 = vmatpush.bf16.xpose.msra.mxu0 %v792
    %839 = vmatpush.bf16.xpose.msra.mxu0 %v789
    %840 = vmatpush.bf16.xpose.msra.mxu0 %v786
    %841 = vmatmul.bf16.gmra.mxu0 %v783
    %v842 = vpop.f32.mrf.mxu0
    %v843 = vadd.f32 %v780, %v842
    %v844 = vpop.f32.mrf.mxu0
    %845 = vdwg.mxu0
    %846 = vmatpush.bf16.xpose.msra.mxu0 %v831
    %847 = vmatpush.bf16.xpose.msra.mxu0 %v828
    %848 = vmatpush.bf16.xpose.msra.mxu0 %v825
    %849 = vmatpush.bf16.xpose.msra.mxu0 %v822
    %850 = vmatpush.bf16.xpose.msra.mxu0 %v819
    %851 = vmatpush.bf16.xpose.msra.mxu0 %v816
    %852 = vmatpush.bf16.xpose.msra.mxu0 %v813
    %853 = vmatpush.bf16.xpose.msra.mxu0 %v810
    %854 = vmatmul.bf16.gmra.mxu0 %v783
    %v855 = vpop.f32.mrf.mxu0
    %v856 = vadd.f32 %v780, %v855
    %v857 = vpop.f32.mrf.mxu0
    %858 = vdwg.mxu0
    %v859 = vxor.u32 %v843, 2147483648
    %v860 = vxor.u32 %v856, 2147483648
    %v861 = vmul.f32 %v859, 1.442695
    %v862 = vpow.pop %v861
    %v863 = vmul.f32 %v860, 1.442695
    %v864 = vpow.pop %v863
    %v865 = vadd.f32 %v862, 1.0
    %v866 = vadd.f32 %v864, 1.0
    %v867 = vrcp.pop %v865
    %v868 = vmul.f32 %v865, %v867
    %v869 = vsub.f32 1.0, %v868
    %v870 = vmul.f32 %v867, %v869
    %v871 = vadd.f32 %v867, %v870
    %vm872 = vweird.f32 %v865
    %vm873 = vweird.f32 %v867
    %vm874 = vmor %vm872, %vm873
    %v875 = vsel %vm874, %v867, %v871
    %v876 = vand.u32 2147483647, %v865
    %vm877 = vcmp.eq.f32.partialorder %v876, 8.507059e+37
    %v878 = vand.u32 %v865, 2147483648
    %v879 = vor.u32 1.1754944e-38, %v878
    %v880 = vsel %vm877, %v879, %v875
    %v881 = vmul.f32 1.0, %v880
    %v882 = vrcp.pop %v866
    %v883 = vmul.f32 %v866, %v882
    %v884 = vsub.f32 1.0, %v883
    %v885 = vmul.f32 %v882, %v884
    %v886 = vadd.f32 %v882, %v885
    %vm887 = vweird.f32 %v866
    %vm888 = vweird.f32 %v882
    %vm889 = vmor %vm887, %vm888
    %v890 = vsel %vm889, %v882, %v886
    %v891 = vand.u32 2147483647, %v866
    %vm892 = vcmp.eq.f32.partialorder %v891, 8.507059e+37
    %v893 = vand.u32 %v866, 2147483648
    %v894 = vor.u32 1.1754944e-38, %v893
    %v895 = vsel %vm892, %v894, %v890
    %v896 = vmul.f32 1.0, %v895
    %v899 = vrot.slane %v896, 7
    %vm900 = vcmask 1040384
    %v901 = vsel %vm900, %v881, %v899
    %v903 = vlaneseq
    %vm904 = vcmp.ge.s32.totalorder %v903, 0
    %vm905 = vcmp.lt.s32.totalorder %v903, 256
    %vm906 = vmand %vm904, %vm905
    %907 = vst.msk [vmem:[#allocation3] sm:$0x3] %vm906, %v901
    // Predicated region
    $region38: #{tpu_custom_call.1} parent=1 // pred_check
      _
    $region39: #{tpu_custom_call.1} parent=1 // pred_check_branch
      %909 = sbr.rel (0) target = $region41
    $region40: #{tpu_custom_call.1} parent=1 // pred_region
      %911 = vsyncadd [#allocation4], 0
      %s913 = sshll.u32 [#allocation3], 4
      %s914 = int_to_ptr.vmem [resolvable:$true] %s913
      %s915 = sshll.u32 %s9, 4
      %s916 = int_to_ptr.hbm [resolvable:$true] %s915
      %918 = dma.vmem_to_hbm [thread:$0]  %s914, 32, %s916, [#allocation4]
    $region41: #{tpu_custom_call.1} parent=1 // pred_fallthru
      _
    // Predicated region
    $region42: #{tpu_custom_call.1} parent=1 // pred_check
      _
    $region43: #{tpu_custom_call.1} parent=1 // pred_check_branch
      %920 = sbr.rel (0) target = $region45
    $region44: #{tpu_custom_call.1} parent=1 // pred_region
      %922 = dma.done [#allocation4], 32
    $region45: #{tpu_custom_call.1} parent=1 // pred_fallthru
      _
    %923 = vsyncpa [#allocation4], 1

</llo_original>
